<compile_context>
chip_gen: v7x
topology: tpu7x:2x2x1
jax: 0.10.0
libtpu: 0.0.40
codegen_flags: <defaults>
</compile_context>

<pallas_src>
import functools

import jax
import jax.numpy as jnp
import numpy as np
from jax.experimental import pallas as pl
from jax.experimental.pallas import tpu as pltpu


# ----------------------------------------------------------------------------
# Pallas kernel
# ----------------------------------------------------------------------------
def _weighted_mean_kernel(num_subgraphs,
                          rw_ref, iw_ref,        # (H, S) f32 in SMEM
                          rfeat_ref, ifeat_ref,  # (S, tile_n, F) f32 in VMEM
                          rout_ref, iout_ref):   # (tile_n, F) f32 in VMEM
    h = pl.program_id(0)
    inv_s = jnp.float32(1.0 / num_subgraphs)

    # Fold the mean's 1/S into the scalar weight (scalar-ALU mul, free slot)
    # so the vector path is S multiply-adds and nothing else.
    r_acc = rfeat_ref[0] * (rw_ref[h, 0] * inv_s)
    i_acc = ifeat_ref[0] * (iw_ref[h, 0] * inv_s)
    for s in range(1, num_subgraphs):  # S is small & static -> fully unrolled
        r_acc = r_acc + rfeat_ref[s] * (rw_ref[h, s] * inv_s)
        i_acc = i_acc + ifeat_ref[s] * (iw_ref[h, s] * inv_s)

    rout_ref[...] = r_acc
    iout_ref[...] = i_acc


def _pick_tile_n(n, max_tile):
    """Largest sublane-aligned (multiple-of-8) divisor of n that is <= max_tile.

    Falls back to the full extent (always legal for a BlockSpec) when no
    aligned divisor exists.
    """
    if n <= max_tile:
        return n
    t = (max_tile // 8) * 8
    while t >= 8:
        if n % t == 0:
            return t
        t -= 8
    return n


def com_onedim_conv_forward(real_feat_list_list, imag_feat_list_list,
                            real_weights, imag_weights, *, max_tile_n=512):
    """Pallas forward of ComOneDimConvolutionWeightSharedAcrossFeatures.

    real_feat_list_list / imag_feat_list_list: [hop][subgraph] -> (N, F) arrays
    real_weights / imag_weights:               [hop]           -> (1, S) arrays
    Returns (real_aggregated_feat_list, imag_aggregated_feat_list),
    each a list of hop_num arrays of shape (N, F).
    """
    hop_num = len(real_feat_list_list)
    num_subgraphs = len(real_feat_list_list[0])
    n, f = real_feat_list_list[0][0].shape

    # Pack to dense arrays: (H, S, N, F) features, (H, S) weights.
    real_feats = jnp.stack(
        [jnp.stack(fl, axis=0) for fl in real_feat_list_list], axis=0
    ).astype(jnp.float32)
    imag_feats = jnp.stack(
        [jnp.stack(fl, axis=0) for fl in imag_feat_list_list], axis=0
    ).astype(jnp.float32)
    real_w = jnp.concatenate([w.reshape(1, -1) for w in real_weights],
                             axis=0).astype(jnp.float32)
    imag_w = jnp.concatenate([w.reshape(1, -1) for w in imag_weights],
                             axis=0).astype(jnp.float32)

    tile_n = _pick_tile_n(n, max_tile_n)
    grid = (hop_num, n // tile_n)

    # (8, 128)-aligned, lane-dense blocks; hop axis squeezed out of the refs.
    feat_spec = pl.BlockSpec((None, num_subgraphs, tile_n, f),
                             lambda h, i: (h, 0, i, 0))
    out_spec = pl.BlockSpec((None, tile_n, f), lambda h, i: (h, i, 0))
    # Tiny weight tables: whole array resident in SMEM, scalar-indexed.
    smem_spec = pl.BlockSpec(memory_space=pltpu.MemorySpace.SMEM)

    kernel = functools.partial(_weighted_mean_kernel, num_subgraphs)

    real_out, imag_out = pl.pallas_call(
        kernel,
        out_shape=(jax.ShapeDtypeStruct((hop_num, n, f), jnp.float32),
                   jax.ShapeDtypeStruct((hop_num, n, f), jnp.float32)),
        grid_spec=pltpu.PrefetchScalarGridSpec(
            num_scalar_prefetch=0,
            grid=grid,
            in_specs=[smem_spec, smem_spec, feat_spec, feat_spec],
            out_specs=[out_spec, out_spec],
        ),
        compiler_params=pltpu.CompilerParams(
            dimension_semantics=("parallel", "parallel")),
    )(real_w, imag_w, real_feats, imag_feats)

    return ([real_out[i] for i in range(hop_num)],
            [imag_out[i] for i in range(hop_num)])


# ----------------------------------------------------------------------------
# Pure-JAX reference (mirrors the PyTorch forward exactly).
# ----------------------------------------------------------------------------
def reference_forward(real_feat_list_list, imag_feat_list_list,
                      real_weights, imag_weights):
    real_out, imag_out = [], []
    for i, feats in enumerate(real_feat_list_list):
        stacked = jnp.stack(feats, axis=2)                    # (N, F, S)
        real_out.append((stacked * real_weights[i]).mean(axis=2))
    for i, feats in enumerate(imag_feat_list_list):
        stacked = jnp.stack(feats, axis=2)
        imag_out.append((stacked * imag_weights[i]).mean(axis=2))
    return real_out, imag_out


if __name__ == "__main__":
    NUM_SUBGRAPHS = 4     # num_subgraphs
    PROP_STEPS = 3        # prop_steps (hop_num)
    N, F = 256, 128       # rows x features (lane-dense feature axis)

    key = jax.random.PRNGKey(0)
    n_keys = 2 * PROP_STEPS * NUM_SUBGRAPHS + 2 * PROP_STEPS
    kit = iter(jax.random.split(key, n_keys))

    real_feat_list_list = [
        [jax.random.normal(next(kit), (N, F), jnp.float32)
         for _ in range(NUM_SUBGRAPHS)]
        for _ in range(PROP_STEPS)]
    imag_feat_list_list = [
        [jax.random.normal(next(kit), (N, F), jnp.float32)
         for _ in range(NUM_SUBGRAPHS)]
        for _ in range(PROP_STEPS)]

    # reset_parameters(): xavier_uniform_ on (1, num_subgraphs) weights.
    bound = float(np.sqrt(6.0 / (1 + NUM_SUBGRAPHS)))
    real_weights = [
        jax.random.uniform(next(kit), (1, NUM_SUBGRAPHS), jnp.float32,
                           minval=-bound, maxval=bound)
        for _ in range(PROP_STEPS)]
    imag_weights = [
        jax.random.uniform(next(kit), (1, NUM_SUBGRAPHS), jnp.float32,
                           minval=-bound, maxval=bound)
        for _ in range(PROP_STEPS)]

    real_agg, imag_agg = com_onedim_conv_forward(
        real_feat_list_list, imag_feat_list_list, real_weights, imag_weights)
    real_agg = [jax.block_until_ready(x) for x in real_agg]
    imag_agg = [jax.block_until_ready(x) for x in imag_agg]

    ref_real, ref_imag = reference_forward(
        real_feat_list_list, imag_feat_list_list, real_weights, imag_weights)

    for got, ref in zip(real_agg + imag_agg, ref_real + ref_imag):
        np.testing.assert_allclose(np.asarray(got), np.asarray(ref),
                                   rtol=1e-5, atol=1e-5)
    print("KERNEL_OK")
</pallas_src>

<mosaic_0001>
module attributes {stable_mosaic.version = 11 : i64} {
  func.func @_weighted_mean_kernel(%arg0: i32, %arg1: i32, %arg2: memref<3x4xf32, #tpu.memory_space<smem>>, %arg3: memref<3x4xf32, #tpu.memory_space<smem>>, %arg4: memref<1x4x256x128xf32, #tpu.memory_space<vmem>>, %arg5: memref<1x4x256x128xf32, #tpu.memory_space<vmem>>, %arg6: memref<1x256x128xf32, #tpu.memory_space<vmem>>, %arg7: memref<1x256x128xf32, #tpu.memory_space<vmem>>) attributes {dimension_semantics = [#tpu.dimension_semantics<parallel>, #tpu.dimension_semantics<parallel>], iteration_bounds = array<i64: 3, 1>, scalar_prefetch = 0 : i64, scratch_operands = 0 : i64, tpu.core_type = #tpu.core_type<tc>, window_params = [{transform_indices = @transform_0, window_bounds = array<i64: 3, 4>}, {transform_indices = @transform_1, window_bounds = array<i64: 3, 4>}, {transform_indices = @transform_2, window_bounds = array<i64: 1, 4, 256, 128>}, {transform_indices = @transform_3, window_bounds = array<i64: 1, 4, 256, 128>}, {transform_indices = @transform_4, window_bounds = array<i64: 1, 256, 128>}, {transform_indices = @transform_5, window_bounds = array<i64: 1, 256, 128>}]} {
    %c0 = arith.constant 0 : index
    %c0_0 = arith.constant 0 : index
    %c0_1 = arith.constant 0 : index
    %c0_2 = arith.constant 0 : index
    %0 = vector.load %arg4[%c0, %c0_0, %c0_1, %c0_2] : memref<1x4x256x128xf32, #tpu.memory_space<vmem>>, vector<1x1x256x128xf32>
    %1 = vector.shape_cast %0 : vector<1x1x256x128xf32> to vector<256x128xf32>
    %2 = arith.index_cast %arg0 : i32 to index
    %c0_3 = arith.constant 0 : index
    %3 = memref.load %arg2[%2, %c0_3] : memref<3x4xf32, #tpu.memory_space<smem>>
    %cst = arith.constant 2.500000e-01 : f32
    %4 = arith.mulf %3, %cst : f32
    %5 = vector.broadcast %4 : f32 to vector<256x128xf32>
    %6 = arith.mulf %1, %5 : vector<256x128xf32>
    %c0_4 = arith.constant 0 : index
    %c0_5 = arith.constant 0 : index
    %c0_6 = arith.constant 0 : index
    %c0_7 = arith.constant 0 : index
    %7 = vector.load %arg5[%c0_4, %c0_5, %c0_6, %c0_7] : memref<1x4x256x128xf32, #tpu.memory_space<vmem>>, vector<1x1x256x128xf32>
    %8 = vector.shape_cast %7 : vector<1x1x256x128xf32> to vector<256x128xf32>
    %9 = arith.index_cast %arg0 : i32 to index
    %c0_8 = arith.constant 0 : index
    %10 = memref.load %arg3[%9, %c0_8] : memref<3x4xf32, #tpu.memory_space<smem>>
    %cst_9 = arith.constant 2.500000e-01 : f32
    %11 = arith.mulf %10, %cst_9 : f32
    %12 = vector.broadcast %11 : f32 to vector<256x128xf32>
    %13 = arith.mulf %8, %12 : vector<256x128xf32>
    %c0_10 = arith.constant 0 : index
    %c1 = arith.constant 1 : index
    %c0_11 = arith.constant 0 : index
    %c0_12 = arith.constant 0 : index
    %14 = vector.load %arg4[%c0_10, %c1, %c0_11, %c0_12] : memref<1x4x256x128xf32, #tpu.memory_space<vmem>>, vector<1x1x256x128xf32>
    %15 = vector.shape_cast %14 : vector<1x1x256x128xf32> to vector<256x128xf32>
    %16 = arith.index_cast %arg0 : i32 to index
    %c1_13 = arith.constant 1 : index
    %17 = memref.load %arg2[%16, %c1_13] : memref<3x4xf32, #tpu.memory_space<smem>>
    %cst_14 = arith.constant 2.500000e-01 : f32
    %18 = arith.mulf %17, %cst_14 : f32
    %19 = vector.broadcast %18 : f32 to vector<256x128xf32>
    %20 = arith.mulf %15, %19 : vector<256x128xf32>
    %21 = arith.addf %6, %20 : vector<256x128xf32>
    %c0_15 = arith.constant 0 : index
    %c1_16 = arith.constant 1 : index
    %c0_17 = arith.constant 0 : index
    %c0_18 = arith.constant 0 : index
    %22 = vector.load %arg5[%c0_15, %c1_16, %c0_17, %c0_18] : memref<1x4x256x128xf32, #tpu.memory_space<vmem>>, vector<1x1x256x128xf32>
    %23 = vector.shape_cast %22 : vector<1x1x256x128xf32> to vector<256x128xf32>
    %24 = arith.index_cast %arg0 : i32 to index
    %c1_19 = arith.constant 1 : index
    %25 = memref.load %arg3[%24, %c1_19] : memref<3x4xf32, #tpu.memory_space<smem>>
    %cst_20 = arith.constant 2.500000e-01 : f32
    %26 = arith.mulf %25, %cst_20 : f32
    %27 = vector.broadcast %26 : f32 to vector<256x128xf32>
    %28 = arith.mulf %23, %27 : vector<256x128xf32>
    %29 = arith.addf %13, %28 : vector<256x128xf32>
    %c0_21 = arith.constant 0 : index
    %c2 = arith.constant 2 : index
    %c0_22 = arith.constant 0 : index
    %c0_23 = arith.constant 0 : index
    %30 = vector.load %arg4[%c0_21, %c2, %c0_22, %c0_23] : memref<1x4x256x128xf32, #tpu.memory_space<vmem>>, vector<1x1x256x128xf32>
    %31 = vector.shape_cast %30 : vector<1x1x256x128xf32> to vector<256x128xf32>
    %32 = arith.index_cast %arg0 : i32 to index
    %c2_24 = arith.constant 2 : index
    %33 = memref.load %arg2[%32, %c2_24] : memref<3x4xf32, #tpu.memory_space<smem>>
    %cst_25 = arith.constant 2.500000e-01 : f32
    %34 = arith.mulf %33, %cst_25 : f32
    %35 = vector.broadcast %34 : f32 to vector<256x128xf32>
    %36 = arith.mulf %31, %35 : vector<256x128xf32>
    %37 = arith.addf %21, %36 : vector<256x128xf32>
    %c0_26 = arith.constant 0 : index
    %c2_27 = arith.constant 2 : index
    %c0_28 = arith.constant 0 : index
    %c0_29 = arith.constant 0 : index
    %38 = vector.load %arg5[%c0_26, %c2_27, %c0_28, %c0_29] : memref<1x4x256x128xf32, #tpu.memory_space<vmem>>, vector<1x1x256x128xf32>
    %39 = vector.shape_cast %38 : vector<1x1x256x128xf32> to vector<256x128xf32>
    %40 = arith.index_cast %arg0 : i32 to index
    %c2_30 = arith.constant 2 : index
    %41 = memref.load %arg3[%40, %c2_30] : memref<3x4xf32, #tpu.memory_space<smem>>
    %cst_31 = arith.constant 2.500000e-01 : f32
    %42 = arith.mulf %41, %cst_31 : f32
    %43 = vector.broadcast %42 : f32 to vector<256x128xf32>
    %44 = arith.mulf %39, %43 : vector<256x128xf32>
    %45 = arith.addf %29, %44 : vector<256x128xf32>
    %c0_32 = arith.constant 0 : index
    %c3 = arith.constant 3 : index
    %c0_33 = arith.constant 0 : index
    %c0_34 = arith.constant 0 : index
    %46 = vector.load %arg4[%c0_32, %c3, %c0_33, %c0_34] : memref<1x4x256x128xf32, #tpu.memory_space<vmem>>, vector<1x1x256x128xf32>
    %47 = vector.shape_cast %46 : vector<1x1x256x128xf32> to vector<256x128xf32>
    %48 = arith.index_cast %arg0 : i32 to index
    %c3_35 = arith.constant 3 : index
    %49 = memref.load %arg2[%48, %c3_35] : memref<3x4xf32, #tpu.memory_space<smem>>
    %cst_36 = arith.constant 2.500000e-01 : f32
    %50 = arith.mulf %49, %cst_36 : f32
    %51 = vector.broadcast %50 : f32 to vector<256x128xf32>
    %52 = arith.mulf %47, %51 : vector<256x128xf32>
    %53 = arith.addf %37, %52 : vector<256x128xf32>
    %c0_37 = arith.constant 0 : index
    %c3_38 = arith.constant 3 : index
    %c0_39 = arith.constant 0 : index
    %c0_40 = arith.constant 0 : index
    %54 = vector.load %arg5[%c0_37, %c3_38, %c0_39, %c0_40] : memref<1x4x256x128xf32, #tpu.memory_space<vmem>>, vector<1x1x256x128xf32>
    %55 = vector.shape_cast %54 : vector<1x1x256x128xf32> to vector<256x128xf32>
    %56 = arith.index_cast %arg0 : i32 to index
    %c3_41 = arith.constant 3 : index
    %57 = memref.load %arg3[%56, %c3_41] : memref<3x4xf32, #tpu.memory_space<smem>>
    %cst_42 = arith.constant 2.500000e-01 : f32
    %58 = arith.mulf %57, %cst_42 : f32
    %59 = vector.broadcast %58 : f32 to vector<256x128xf32>
    %60 = arith.mulf %55, %59 : vector<256x128xf32>
    %61 = arith.addf %45, %60 : vector<256x128xf32>
    %c0_43 = arith.constant 0 : index
    %c0_44 = arith.constant 0 : index
    %c0_45 = arith.constant 0 : index
    %62 = vector.load %arg6[%c0_43, %c0_44, %c0_45] : memref<1x256x128xf32, #tpu.memory_space<vmem>>, vector<1x256x128xf32>
    %63 = vector.shape_cast %62 : vector<1x256x128xf32> to vector<256x128xf32>
    %64 = vector.shape_cast %53 : vector<256x128xf32> to vector<1x256x128xf32>
    tpu.vector_store %arg6[%c0_43, %c0_44, %c0_45], %64 {strides = array<i32>} : memref<1x256x128xf32, #tpu.memory_space<vmem>>, vector<1x256x128xf32>,
    %c0_46 = arith.constant 0 : index
    %c0_47 = arith.constant 0 : index
    %c0_48 = arith.constant 0 : index
    %65 = vector.load %arg7[%c0_46, %c0_47, %c0_48] : memref<1x256x128xf32, #tpu.memory_space<vmem>>, vector<1x256x128xf32>
    %66 = vector.shape_cast %65 : vector<1x256x128xf32> to vector<256x128xf32>
    %67 = vector.shape_cast %61 : vector<256x128xf32> to vector<1x256x128xf32>
    tpu.vector_store %arg7[%c0_46, %c0_47, %c0_48], %67 {strides = array<i32>} : memref<1x256x128xf32, #tpu.memory_space<vmem>>, vector<1x256x128xf32>,
    return
  }
  func.func @transform_0(%arg0: i32, %arg1: i32) -> (i32, i32) {
    %c0_i32 = arith.constant 0 : i32
    %c0_i32_0 = arith.constant 0 : i32
    %c0_i32_1 = arith.constant 0 : i32
    return %c0_i32, %c0_i32_0 : i32, i32
  }
  func.func @transform_1(%arg0: i32, %arg1: i32) -> (i32, i32) {
    %c0_i32 = arith.constant 0 : i32
    %c0_i32_0 = arith.constant 0 : i32
    %c0_i32_1 = arith.constant 0 : i32
    return %c0_i32, %c0_i32_0 : i32, i32
  }
  func.func @transform_2(%arg0: i32, %arg1: i32) -> (i32, i32, i32, i32) {
    %c0_i32 = arith.constant 0 : i32
    %c0_i32_0 = arith.constant 0 : i32
    %c0_i32_1 = arith.constant 0 : i32
    return %arg0, %c0_i32, %arg1, %c0_i32_0 : i32, i32, i32, i32
  }
  func.func @transform_3(%arg0: i32, %arg1: i32) -> (i32, i32, i32, i32) {
    %c0_i32 = arith.constant 0 : i32
    %c0_i32_0 = arith.constant 0 : i32
    %c0_i32_1 = arith.constant 0 : i32
    return %arg0, %c0_i32, %arg1, %c0_i32_0 : i32, i32, i32, i32
  }
  func.func @transform_4(%arg0: i32, %arg1: i32) -> (i32, i32, i32) {
    %c0_i32 = arith.constant 0 : i32
    %c0_i32_0 = arith.constant 0 : i32
    return %arg0, %arg1, %c0_i32 : i32, i32, i32
  }
  func.func @transform_5(%arg0: i32, %arg1: i32) -> (i32, i32, i32) {
    %c0_i32 = arith.constant 0 : i32
    %c0_i32_0 = arith.constant 0 : i32
    return %arg0, %arg1, %c0_i32 : i32, i32, i32
  }
}

</mosaic_0001>

<llo_original>
// kernel: tpu_custom_call.1
$region0: #{tpu_custom_call.1}
  #allocation0 [shape = 'u32[]', space=smem, size = 0x4, offset = 0x4, fixed_abs, tag = 'smem constant byte address 0x4 - core index']
  #allocation1 [shape = 'u32[144,128]{1,0:T(1,128)}', space=vmem, size = 0x12000, scoped, tag = 'internal scratch']
  %s0 = inlined_call_operand.hbm [shape: f32[3,4], index: 0, kind: input, shape index: {}]
  %s1 = inlined_call_operand.hbm [shape: f32[3,4], index: 1, kind: input, shape index: {}]
  %s2 = inlined_call_operand.hbm [shape: f32[3,4,256,128], index: 2, kind: input, shape index: {}]
  %s3 = inlined_call_operand.hbm [shape: f32[3,4,256,128], index: 3, kind: input, shape index: {}]
  %s4 = inlined_call_operand.hbm [shape: f32[3,256,128], index: 4, kind: output, shape index: {0}]
  %s5 = inlined_call_operand.hbm [shape: f32[3,256,128], index: 5, kind: output, shape index: {1}]
  %6 = xla_tuple %s4, %s5
  %s7 = sld [smem:[#allocation0]]
  $region73: #{tpu_custom_call.1} parent=0
    _
  %s9 = ssub.s32 1, %s7
  %s10 = scalar_select 0, %s9, %s7
  $region1: #{tpu_custom_call.1} parent=0
    #allocation2 [shape = 'u8[2048]{0}', space=smem, size = 0x800, scoped, tag = 'input window, operand 0, single buffered']
    #allocation3 [shape = 's32[2]{0}', space=sflag, size = 0x8, scoped, tag = 'scoped memory for tpu_custom_call.1']
    #allocation4 [shape = 's32[2]{0}', space=sflag, size = 0x8, scoped, tag = 'scoped memory for tpu_custom_call.1']
    #allocation5 [shape = 's32[2]{0}', space=sflag, size = 0x8, scoped, tag = 'scoped memory for tpu_custom_call.1']
    #allocation6 [shape = 'u8[2048]{0}', space=smem, size = 0x800, scoped, tag = 'input window, operand 1, single buffered']
    #allocation7 [shape = 's32[1]{0}', space=sflag, size = 0x4, scoped, tag = 'scoped memory for tpu_custom_call.1']
    #allocation8 [shape = 'u8[1048576]{0}', space=vmem, size = 0x100000, scoped, tag = 'input window, operand 2']
    #allocation9 [shape = 'u8[1048576]{0}', space=vmem, size = 0x100000, scoped, tag = 'input window, operand 3']
    #allocation10 [shape = 's32[2]{0}', space=sflag, size = 0x8, scoped, tag = 'scoped memory for tpu_custom_call.1']
    #allocation11 [shape = 'u8[262144]{0}', space=vmem, size = 0x40000, scoped, tag = 'output window, operand 0']
    #allocation12 [shape = 'u8[262144]{0}', space=vmem, size = 0x40000, scoped, tag = 'output window, operand 1']
    #allocation13 [shape = 's32[2]{0}', space=sflag, size = 0x8, scoped, tag = 'scoped memory for tpu_custom_call.1']
    %11 = vsyncpa [#allocation5], 0
    %12 = vsyncpa [#allocation7], 0
    %13 = vsyncpa [#allocation3], 0
    %s14 = scalar_lea.sflag [#allocation3], 1
    %15 = vsyncpa %s14, 0
    %16 = vsyncpa [#allocation10], 0
    %s17 = scalar_lea.sflag [#allocation10], 1
    %18 = vsyncpa %s17, 0
    %19 = vsyncpa [#allocation4], 0
    %s20 = scalar_lea.sflag [#allocation4], 1
    %21 = vsyncpa %s20, 0
    %22 = vsyncpa [#allocation13], 0
    %s23 = scalar_lea.sflag [#allocation13], 1
    %24 = vsyncpa %s23, 0
    loop: start=0, step=1, limit=5
    $region2: #{tpu_custom_call.1} parent=1 // loop_pre_header
      _
    $region3: #{tpu_custom_call.1} parent=1 // loop_header
      %s26 = sphi 0, %s30
      %p27 = scmp.ge.s32.totalorder %s26, 5
      %s33 = sphi 0, %s45
      %s34 = sphi 0, %s41
      %s35 = sphi 0, %s33
      %s36 = sphi 0, %s34
      %s37 = sphi 0, %s35
      %s38 = sphi 0, %s36
      %s46 = sphi 0, %s46
      %s48 = sphi 0, %s46
      %s49 = sphi 0, %s48
      %s63 = sphi 0, %s49
      %s67 = sphi 0, %s67
      %s69 = sphi 0, %s67
      %s70 = sphi 0, %s69
      %s84 = sphi 0, %s70
      %s92 = sphi 0, %s94
      %s95 = sphi 0, %s92
      %s96 = sphi 0, %s95
      %s112 = sphi 0, %s96
      %s120 = sphi 0, %s122
      %s123 = sphi 0, %s120
      %s124 = sphi 0, %s123
      %s140 = sphi 0, %s124
      %s148 = sphi 0, %s150
      %s151 = sphi 0, %s148
      %s152 = sphi 0, %s151
      %s168 = sphi 0, %s152
      %s176 = sphi 0, %s178
      %s179 = sphi 0, %s176
      %s180 = sphi 0, %s179
      %s196 = sphi 0, %s180
    $region4: #{tpu_custom_call.1} parent=1 // loop_header_branch
      %29 = sbr.rel (%p27) target = $region8
    $region5: #{tpu_custom_call.1} parent=1 // loop_body
      %s31 = ssub.s32 %s26, 1
      %s32 = ssub.s32 %s26, 2
      %s39 = sadd.s32 1, %s34
      %p40 = scmp.ge.s32.totalorder %s39, 1
      %s41 = scalar_select %p40, 0, %s39
      %s42 = sadd.s32 1, %s33
      %s43 = scalar_select %p40, %s42, %s33
      %p44 = scmp.ge.s32.totalorder %s43, 3
      %s45 = scalar_select %p44, 0, %s43
      %s47 = sadd.s32 %s46, 1
      %p50 = scmp.eq.s32.totalorder %s26, 2
      %p51 = scmp.ne.s32.totalorder %s46, %s48
      %p52 = scmp.eq.s32.totalorder %s26, 0
      %p53 = por %p51, %p52
      %p54 = scmp.ne.s32.totalorder %s46, %s48
      %p55 = scmp.eq.s32.totalorder %s31, 2
      %p56 = por %p54, %p55
      %p57 = scmp.ne.s32.totalorder %s48, %s49
      %p58 = scmp.eq.s32.totalorder %s31, 0
      %p59 = por %p57, %p58
      %p60 = scmp.ne.s32.totalorder %s48, %s49
      %p61 = scmp.eq.s32.totalorder %s32, 2
      %p62 = por %p60, %p61
      %p64 = scmp.ne.s32.totalorder %s49, %s63
      %p65 = scmp.eq.s32.totalorder %s32, 0
      %p66 = por %p64, %p65
      %s68 = sadd.s32 %s67, 1
      %p71 = scmp.eq.s32.totalorder %s26, 2
      %p72 = scmp.ne.s32.totalorder %s67, %s69
      %p73 = scmp.eq.s32.totalorder %s26, 0
      %p74 = por %p72, %p73
      %p75 = scmp.ne.s32.totalorder %s67, %s69
      %p76 = scmp.eq.s32.totalorder %s31, 2
      %p77 = por %p75, %p76
      %p78 = scmp.ne.s32.totalorder %s69, %s70
      %p79 = scmp.eq.s32.totalorder %s31, 0
      %p80 = por %p78, %p79
      %p81 = scmp.ne.s32.totalorder %s69, %s70
      %p82 = scmp.eq.s32.totalorder %s32, 2
      %p83 = por %p81, %p82
      %p85 = scmp.ne.s32.totalorder %s70, %s84
      %p86 = scmp.eq.s32.totalorder %s32, 0
      %p87 = por %p85, %p86
      %s88 = ssub.s32 %s33, %s45
      %s89 = ssub.s32 %s34, %s41
      %s90 = sor.u32 %s88, %s89
      %p91 = scmp.eq.s32.totalorder %s90, 0
      %s93 = sadd.s32 %s92, 1
      %s94 = scalar_select %p91, %s92, %s93
      %p97 = pneg %p91
      %p98 = scmp.eq.s32.totalorder %s26, 2
      %p99 = por %p97, %p98
      %p100 = scmp.ne.s32.totalorder %s92, %s95
      %p101 = scmp.eq.s32.totalorder %s26, 0
      %p102 = por %p100, %p101
      %p103 = scmp.ne.s32.totalorder %s92, %s95
      %p104 = scmp.eq.s32.totalorder %s31, 2
      %p105 = por %p103, %p104
      %p106 = scmp.ne.s32.totalorder %s95, %s96
      %p107 = scmp.eq.s32.totalorder %s31, 0
      %p108 = por %p106, %p107
      %p109 = scmp.ne.s32.totalorder %s95, %s96
      %p110 = scmp.eq.s32.totalorder %s32, 2
      %p111 = por %p109, %p110
      %p113 = scmp.ne.s32.totalorder %s96, %s112
      %p114 = scmp.eq.s32.totalorder %s32, 0
      %p115 = por %p113, %p114
      %s116 = ssub.s32 %s33, %s45
      %s117 = ssub.s32 %s34, %s41
      %s118 = sor.u32 %s116, %s117
      %p119 = scmp.eq.s32.totalorder %s118, 0
      %s121 = sadd.s32 %s120, 1
      %s122 = scalar_select %p119, %s120, %s121
      %p125 = pneg %p119
      %p126 = scmp.eq.s32.totalorder %s26, 2
      %p127 = por %p125, %p126
      %p128 = scmp.ne.s32.totalorder %s120, %s123
      %p129 = scmp.eq.s32.totalorder %s26, 0
      %p130 = por %p128, %p129
      %p131 = scmp.ne.s32.totalorder %s120, %s123
      %p132 = scmp.eq.s32.totalorder %s31, 2
      %p133 = por %p131, %p132
      %p134 = scmp.ne.s32.totalorder %s123, %s124
      %p135 = scmp.eq.s32.totalorder %s31, 0
      %p136 = por %p134, %p135
      %p137 = scmp.ne.s32.totalorder %s123, %s124
      %p138 = scmp.eq.s32.totalorder %s32, 2
      %p139 = por %p137, %p138
      %p141 = scmp.ne.s32.totalorder %s124, %s140
      %p142 = scmp.eq.s32.totalorder %s32, 0
      %p143 = por %p141, %p142
      %s144 = ssub.s32 %s33, %s45
      %s145 = ssub.s32 %s34, %s41
      %s146 = sor.u32 %s144, %s145
      %p147 = scmp.eq.s32.totalorder %s146, 0
      %s149 = sadd.s32 %s148, 1
      %s150 = scalar_select %p147, %s148, %s149
      %p153 = pneg %p147
      %p154 = scmp.eq.s32.totalorder %s26, 2
      %p155 = por %p153, %p154
      %p156 = scmp.ne.s32.totalorder %s148, %s151
      %p157 = scmp.eq.s32.totalorder %s26, 0
      %p158 = por %p156, %p157
      %p159 = scmp.ne.s32.totalorder %s148, %s151
      %p160 = scmp.eq.s32.totalorder %s31, 2
      %p161 = por %p159, %p160
      %p162 = scmp.ne.s32.totalorder %s151, %s152
      %p163 = scmp.eq.s32.totalorder %s31, 0
      %p164 = por %p162, %p163
      %p165 = scmp.ne.s32.totalorder %s151, %s152
      %p166 = scmp.eq.s32.totalorder %s32, 2
      %p167 = por %p165, %p166
      %p169 = scmp.ne.s32.totalorder %s152, %s168
      %p170 = scmp.eq.s32.totalorder %s32, 0
      %p171 = por %p169, %p170
      %s172 = ssub.s32 %s33, %s45
      %s173 = ssub.s32 %s34, %s41
      %s174 = sor.u32 %s172, %s173
      %p175 = scmp.eq.s32.totalorder %s174, 0
      %s177 = sadd.s32 %s176, 1
      %s178 = scalar_select %p175, %s176, %s177
      %p181 = pneg %p175
      %p182 = scmp.eq.s32.totalorder %s26, 2
      %p183 = por %p181, %p182
      %p184 = scmp.ne.s32.totalorder %s176, %s179
      %p185 = scmp.eq.s32.totalorder %s26, 0
      %p186 = por %p184, %p185
      %p187 = scmp.ne.s32.totalorder %s176, %s179
      %p188 = scmp.eq.s32.totalorder %s31, 2
      %p189 = por %p187, %p188
      %p190 = scmp.ne.s32.totalorder %s179, %s180
      %p191 = scmp.eq.s32.totalorder %s31, 0
      %p192 = por %p190, %p191
      %p193 = scmp.ne.s32.totalorder %s179, %s180
      %p194 = scmp.eq.s32.totalorder %s32, 2
      %p195 = por %p193, %p194
      %p197 = scmp.ne.s32.totalorder %s180, %s196
      %p198 = scmp.eq.s32.totalorder %s32, 0
      %p199 = por %p197, %p198
      %p200 = scmp.le.s32.totalorder 1, %s26
      %p201 = scmp.lt.s32.totalorder %s26, 4
      %p202 = pnand %p200, %p201
      %p203 = pneg %p202
      // Predicated region
      $region9: #{tpu_custom_call.1} parent=5 // pred_check
        _
      $region10: #{tpu_custom_call.1} parent=5 // pred_check_branch
        %205 = sbr.rel (%p202) target = $region12
      $region11: #{tpu_custom_call.1} parent=5 // pred_region
        %s206 = ssub.s32 %s26, 1
        // Predicated region
        $region13: #{tpu_custom_call.1} parent=11 // pred_check
          %p207 = pneg %p59
        $region14: #{tpu_custom_call.1} parent=11 // pred_check_branch
          %209 = sbr.rel (%p207) target = $region16
        $region15: #{tpu_custom_call.1} parent=11 // pred_region
          %s211 = ssub.s32 64, 64
          %212 = vsyncadd [#allocation5], %s211
          %215 = dma.hbm_to_smem %s0, 64, [#allocation2], [#allocation5]
        $region16: #{tpu_custom_call.1} parent=11 // pred_fallthru
          _
        // Predicated region
        $region17: #{tpu_custom_call.1} parent=11 // pred_check
          %p216 = pneg %p80
        $region18: #{tpu_custom_call.1} parent=11 // pred_check_branch
          %218 = sbr.rel (%p216) target = $region20
        $region19: #{tpu_custom_call.1} parent=11 // pred_region
          %s220 = ssub.s32 64, 64
          %221 = vsyncadd [#allocation7], %s220
          %224 = dma.hbm_to_smem %s1, 64, [#allocation6], [#allocation7]
        $region20: #{tpu_custom_call.1} parent=11 // pred_fallthru
          _
      $region12: #{tpu_custom_call.1} parent=5 // pred_fallthru
        _
      %p225 = scmp.lt.s32.totalorder %s26, 3
      // Predicated region
      $region21: #{tpu_custom_call.1} parent=5 // pred_check
        %p226 = pneg %p225
      $region22: #{tpu_custom_call.1} parent=5 // pred_check_branch
        %228 = sbr.rel (%p226) target = $region24
      $region23: #{tpu_custom_call.1} parent=5 // pred_region
        // Predicated region
        $region25: #{tpu_custom_call.1} parent=23 // pred_check
          %p229 = pneg %p102
        $region26: #{tpu_custom_call.1} parent=23 // pred_check_branch
          %231 = sbr.rel (%p229) target = $region28
        $region27: #{tpu_custom_call.1} parent=23 // pred_region
          %s232 = sand.u32 %s92, 1
          %s233 = scalar_lea.sflag [#allocation3], %s232
          %s234 = sand.u32 %s92, 1
          %s235 = smul.addr %s234, 1024
          %s236 = scalar_lea.vmem [#allocation8], %s235
          %s237 = smul.u32 32, %s34
          %s239 = ssub.s32 16384, 16384
          %240 = vsyncadd %s233, %s239
          %s241 = smul.addr %s33, 128
          %s242 = sadd.s32 %s237, %s241
          %s243 = smul.addr %s242, 128
          %s244 = scalar_lea.hbm %s2, %s243
          %s245 = sshll.u32 %s236, 4
          %s246 = int_to_ptr.vmem [resolvable:$true] %s245
          %251 = dma.hbm_to_vmem [thread:$0]  %s244, 16384, %s246, %s233, 128, 128, 8
        $region28: #{tpu_custom_call.1} parent=23 // pred_fallthru
          _
        // Predicated region
        $region29: #{tpu_custom_call.1} parent=23 // pred_check
          %p252 = pneg %p130
        $region30: #{tpu_custom_call.1} parent=23 // pred_check_branch
          %254 = sbr.rel (%p252) target = $region32
        $region31: #{tpu_custom_call.1} parent=23 // pred_region
          %s255 = sand.u32 %s120, 1
          %s256 = scalar_lea.sflag [#allocation10], %s255
          %s257 = sand.u32 %s120, 1
          %s258 = smul.addr %s257, 1024
          %s259 = scalar_lea.vmem [#allocation9], %s258
          %s260 = smul.u32 32, %s34
          %s262 = ssub.s32 16384, 16384
          %263 = vsyncadd %s256, %s262
          %s264 = smul.addr %s33, 128
          %s265 = sadd.s32 %s260, %s264
          %s266 = smul.addr %s265, 128
          %s267 = scalar_lea.hbm %s3, %s266
          %s268 = sshll.u32 %s259, 4
          %s269 = int_to_ptr.vmem [resolvable:$true] %s268
          %274 = dma.hbm_to_vmem [thread:$0]  %s267, 16384, %s269, %s256, 128, 128, 8
        $region32: #{tpu_custom_call.1} parent=23 // pred_fallthru
          _
      $region24: #{tpu_custom_call.1} parent=5 // pred_fallthru
        _
      %p275 = scmp.le.s32.totalorder 1, %s26
      %p276 = scmp.lt.s32.totalorder %s26, 4
      %p277 = pnand %p275, %p276
      %p278 = pneg %p277
      // Predicated region
      $region33: #{tpu_custom_call.1} parent=5 // pred_check
        _
      $region34: #{tpu_custom_call.1} parent=5 // pred_check_branch
        %280 = sbr.rel (%p277) target = $region36
      $region35: #{tpu_custom_call.1} parent=5 // pred_region
        %s281 = ssub.s32 %s26, 1
        // Predicated region
        $region37: #{tpu_custom_call.1} parent=35 // pred_check
          %p282 = pneg %p59
        $region38: #{tpu_custom_call.1} parent=35 // pred_check_branch
          %284 = sbr.rel (%p282) target = $region40
        $region39: #{tpu_custom_call.1} parent=35 // pred_region
          %285 = dma.done [#allocation5], 64
        $region40: #{tpu_custom_call.1} parent=35 // pred_fallthru
          _
        // Predicated region
        $region41: #{tpu_custom_call.1} parent=35 // pred_check
          %p286 = pneg %p80
        $region42: #{tpu_custom_call.1} parent=35 // pred_check_branch
          %288 = sbr.rel (%p286) target = $region44
        $region43: #{tpu_custom_call.1} parent=35 // pred_region
          %289 = dma.done [#allocation7], 64
        $region44: #{tpu_custom_call.1} parent=35 // pred_fallthru
          _
        %s290 = sand.u32 %s95, 1
        %s291 = scalar_lea.sflag [#allocation3], %s290
        %s292 = sand.u32 %s95, 1
        %s293 = smul.addr %s292, 1024
        %s294 = scalar_lea.vmem [#allocation8], %s293
        // Predicated region
        $region45: #{tpu_custom_call.1} parent=35 // pred_check
          %p295 = pneg %p108
        $region46: #{tpu_custom_call.1} parent=35 // pred_check_branch
          %297 = sbr.rel (%p295) target = $region48
        $region47: #{tpu_custom_call.1} parent=35 // pred_region
          %298 = dma.done %s291, 16384
        $region48: #{tpu_custom_call.1} parent=35 // pred_fallthru
          _
        %s299 = sand.u32 %s123, 1
        %s300 = scalar_lea.sflag [#allocation10], %s299
        %s301 = sand.u32 %s123, 1
        %s302 = smul.addr %s301, 1024
        %s303 = scalar_lea.vmem [#allocation9], %s302
        // Predicated region
        $region49: #{tpu_custom_call.1} parent=35 // pred_check
          %p304 = pneg %p136
        $region50: #{tpu_custom_call.1} parent=35 // pred_check_branch
          %306 = sbr.rel (%p304) target = $region52
        $region51: #{tpu_custom_call.1} parent=35 // pred_region
          %307 = dma.done %s300, 16384
        $region52: #{tpu_custom_call.1} parent=35 // pred_fallthru
          _
        %308 = sfence
        %p309 = pneg %p59
        %p310 = pneg %p56
        %p311 = pneg %p80
        %p312 = pneg %p77
        %s313 = sand.u32 %s95, 1
        %s314 = scalar_lea.sflag [#allocation3], %s313
        %s315 = sand.u32 %s95, 1
        %s316 = smul.addr %s315, 1024
        %s317 = scalar_lea.vmem [#allocation8], %s316
        %p318 = pneg %p108
        %p319 = pneg %p105
        %s320 = sand.u32 %s123, 1
        %s321 = scalar_lea.sflag [#allocation10], %s320
        %s322 = sand.u32 %s123, 1
        %s323 = smul.addr %s322, 1024
        %s324 = scalar_lea.vmem [#allocation9], %s323
        %p325 = pneg %p136
        %p326 = pneg %p133
        %p327 = pneg %p164
        %p328 = pneg %p161
        %s329 = sand.u32 %s151, 1
        %s330 = scalar_lea.sflag [#allocation4], %s329
        %s331 = sand.u32 %s151, 1
        %s332 = smul.addr %s331, 256
        %s333 = scalar_lea.vmem [#allocation11], %s332
        %p334 = pneg %p192
        %p335 = pneg %p189
        %s336 = sand.u32 %s179, 1
        %s337 = scalar_lea.sflag [#allocation13], %s336
        %s338 = sand.u32 %s179, 1
        %s339 = smul.addr %s338, 256
        %s340 = scalar_lea.vmem [#allocation12], %s339
        %s341 = smul.u32 32, %s36
        %s342 = smul.u32 32, %s36
        %s343 = smul.u32 32, %s36
        %s344 = smul.u32 32, %s36
        %v345 = vld [vmem:[%s294] sm:$0xff]
        %v346 = vld [vmem:[%s294 + $0x8] sm:$0xff]
        %v347 = vld [vmem:[%s294 + $0x10] sm:$0xff]
        %v348 = vld [vmem:[%s294 + $0x18] sm:$0xff]
        %v349 = vld [vmem:[%s294 + $0x20] sm:$0xff]
        %v350 = vld [vmem:[%s294 + $0x28] sm:$0xff]
        %v351 = vld [vmem:[%s294 + $0x30] sm:$0xff]
        %v352 = vld [vmem:[%s294 + $0x38] sm:$0xff]
        %v353 = vld [vmem:[%s294 + $0x40] sm:$0xff]
        %v354 = vld [vmem:[%s294 + $0x48] sm:$0xff]
        %v355 = vld [vmem:[%s294 + $0x50] sm:$0xff]
        %v356 = vld [vmem:[%s294 + $0x58] sm:$0xff]
        %v357 = vld [vmem:[%s294 + $0x60] sm:$0xff]
        %v358 = vld [vmem:[%s294 + $0x68] sm:$0xff]
        %v359 = vld [vmem:[%s294 + $0x70] sm:$0xff]
        %v360 = vld [vmem:[%s294 + $0x78] sm:$0xff]
        %v361 = vld [vmem:[%s294 + $0x80] sm:$0xff]
        %v362 = vld [vmem:[%s294 + $0x88] sm:$0xff]
        %v363 = vld [vmem:[%s294 + $0x90] sm:$0xff]
        %v364 = vld [vmem:[%s294 + $0x98] sm:$0xff]
        %v365 = vld [vmem:[%s294 + $0xa0] sm:$0xff]
        %v366 = vld [vmem:[%s294 + $0xa8] sm:$0xff]
        %v367 = vld [vmem:[%s294 + $0xb0] sm:$0xff]
        %v368 = vld [vmem:[%s294 + $0xb8] sm:$0xff]
        %v369 = vld [vmem:[%s294 + $0xc0] sm:$0xff]
        %v370 = vld [vmem:[%s294 + $0xc8] sm:$0xff]
        %v371 = vld [vmem:[%s294 + $0xd0] sm:$0xff]
        %v372 = vld [vmem:[%s294 + $0xd8] sm:$0xff]
        %v373 = vld [vmem:[%s294 + $0xe0] sm:$0xff]
        %v374 = vld [vmem:[%s294 + $0xe8] sm:$0xff]
        %v375 = vld [vmem:[%s294 + $0xf0] sm:$0xff]
        %v376 = vld [vmem:[%s294 + $0xf8] sm:$0xff]
        %s377 = smul.u32 %s35, 128
        %s378 = sld [smem:[#allocation2 + %s377]]
        %s379 = smul.f32 %s378, 0.25
        %v380 = vstv %s379
        %v381 = vmul.f32 %v345, %v380
        %v382 = vmul.f32 %v346, %v380
        %v383 = vmul.f32 %v347, %v380
        %v384 = vmul.f32 %v348, %v380
        %v385 = vmul.f32 %v349, %v380
        %v386 = vmul.f32 %v350, %v380
        %v387 = vmul.f32 %v351, %v380
        %v388 = vmul.f32 %v352, %v380
        %v389 = vmul.f32 %v353, %v380
        %v390 = vmul.f32 %v354, %v380
        %v391 = vmul.f32 %v355, %v380
        %v392 = vmul.f32 %v356, %v380
        %v393 = vmul.f32 %v357, %v380
        %v394 = vmul.f32 %v358, %v380
        %v395 = vmul.f32 %v359, %v380
        %v396 = vmul.f32 %v360, %v380
        %v397 = vmul.f32 %v361, %v380
        %v398 = vmul.f32 %v362, %v380
        %v399 = vmul.f32 %v363, %v380
        %v400 = vmul.f32 %v364, %v380
        %v401 = vmul.f32 %v365, %v380
        %v402 = vmul.f32 %v366, %v380
        %v403 = vmul.f32 %v367, %v380
        %v404 = vmul.f32 %v368, %v380
        %v405 = vmul.f32 %v369, %v380
        %v406 = vmul.f32 %v370, %v380
        %v407 = vmul.f32 %v371, %v380
        %v408 = vmul.f32 %v372, %v380
        %v409 = vmul.f32 %v373, %v380
        %v410 = vmul.f32 %v374, %v380
        %v411 = vmul.f32 %v375, %v380
        %v412 = vmul.f32 %v376, %v380
        %v413 = vld [vmem:[%s303] sm:$0xff]
        %v414 = vld [vmem:[%s303 + $0x8] sm:$0xff]
        %v415 = vld [vmem:[%s303 + $0x10] sm:$0xff]
        %v416 = vld [vmem:[%s303 + $0x18] sm:$0xff]
        %v417 = vld [vmem:[%s303 + $0x20] sm:$0xff]
        %v418 = vld [vmem:[%s303 + $0x28] sm:$0xff]
        %v419 = vld [vmem:[%s303 + $0x30] sm:$0xff]
        %v420 = vld [vmem:[%s303 + $0x38] sm:$0xff]
        %v421 = vld [vmem:[%s303 + $0x40] sm:$0xff]
        %v422 = vld [vmem:[%s303 + $0x48] sm:$0xff]
        %v423 = vld [vmem:[%s303 + $0x50] sm:$0xff]
        %v424 = vld [vmem:[%s303 + $0x58] sm:$0xff]
        %v425 = vld [vmem:[%s303 + $0x60] sm:$0xff]
        %v426 = vld [vmem:[%s303 + $0x68] sm:$0xff]
        %v427 = vld [vmem:[%s303 + $0x70] sm:$0xff]
        %v428 = vld [vmem:[%s303 + $0x78] sm:$0xff]
        %v429 = vld [vmem:[%s303 + $0x80] sm:$0xff]
        %v430 = vld [vmem:[%s303 + $0x88] sm:$0xff]
        %v431 = vld [vmem:[%s303 + $0x90] sm:$0xff]
        %v432 = vld [vmem:[%s303 + $0x98] sm:$0xff]
        %v433 = vld [vmem:[%s303 + $0xa0] sm:$0xff]
        %v434 = vld [vmem:[%s303 + $0xa8] sm:$0xff]
        %v435 = vld [vmem:[%s303 + $0xb0] sm:$0xff]
        %v436 = vld [vmem:[%s303 + $0xb8] sm:$0xff]
        %v437 = vld [vmem:[%s303 + $0xc0] sm:$0xff]
        %v438 = vld [vmem:[%s303 + $0xc8] sm:$0xff]
        %v439 = vld [vmem:[%s303 + $0xd0] sm:$0xff]
        %v440 = vld [vmem:[%s303 + $0xd8] sm:$0xff]
        %v441 = vld [vmem:[%s303 + $0xe0] sm:$0xff]
        %v442 = vld [vmem:[%s303 + $0xe8] sm:$0xff]
        %v443 = vld [vmem:[%s303 + $0xf0] sm:$0xff]
        %v444 = vld [vmem:[%s303 + $0xf8] sm:$0xff]
        %s445 = sld [smem:[#allocation6 + %s377]]
        %s446 = smul.f32 %s445, 0.25
        %v447 = vstv %s446
        %v448 = vmul.f32 %v413, %v447
        %v449 = vmul.f32 %v414, %v447
        %v450 = vmul.f32 %v415, %v447
        %v451 = vmul.f32 %v416, %v447
        %v452 = vmul.f32 %v417, %v447
        %v453 = vmul.f32 %v418, %v447
        %v454 = vmul.f32 %v419, %v447
        %v455 = vmul.f32 %v420, %v447
        %v456 = vmul.f32 %v421, %v447
        %v457 = vmul.f32 %v422, %v447
        %v458 = vmul.f32 %v423, %v447
        %v459 = vmul.f32 %v424, %v447
        %v460 = vmul.f32 %v425, %v447
        %v461 = vmul.f32 %v426, %v447
        %v462 = vmul.f32 %v427, %v447
        %v463 = vmul.f32 %v428, %v447
        %v464 = vmul.f32 %v429, %v447
        %v465 = vmul.f32 %v430, %v447
        %v466 = vmul.f32 %v431, %v447
        %v467 = vmul.f32 %v432, %v447
        %v468 = vmul.f32 %v433, %v447
        %v469 = vmul.f32 %v434, %v447
        %v470 = vmul.f32 %v435, %v447
        %v471 = vmul.f32 %v436, %v447
        %v472 = vmul.f32 %v437, %v447
        %v473 = vmul.f32 %v438, %v447
        %v474 = vmul.f32 %v439, %v447
        %v475 = vmul.f32 %v440, %v447
        %v476 = vmul.f32 %v441, %v447
        %v477 = vmul.f32 %v442, %v447
        %v478 = vmul.f32 %v443, %v447
        %v479 = vmul.f32 %v444, %v447
        %s480 = scalar_lea.vmem %s294, 256 [#allocation8]
        %v481 = vld [vmem:[%s480] sm:$0xff]
        %v482 = vld [vmem:[%s480 + $0x8] sm:$0xff]
        %v483 = vld [vmem:[%s480 + $0x10] sm:$0xff]
        %v484 = vld [vmem:[%s480 + $0x18] sm:$0xff]
        %v485 = vld [vmem:[%s480 + $0x20] sm:$0xff]
        %v486 = vld [vmem:[%s480 + $0x28] sm:$0xff]
        %v487 = vld [vmem:[%s480 + $0x30] sm:$0xff]
        %v488 = vld [vmem:[%s480 + $0x38] sm:$0xff]
        %v489 = vld [vmem:[%s480 + $0x40] sm:$0xff]
        %v490 = vld [vmem:[%s480 + $0x48] sm:$0xff]
        %v491 = vld [vmem:[%s480 + $0x50] sm:$0xff]
        %v492 = vld [vmem:[%s480 + $0x58] sm:$0xff]
        %v493 = vld [vmem:[%s480 + $0x60] sm:$0xff]
        %v494 = vld [vmem:[%s480 + $0x68] sm:$0xff]
        %v495 = vld [vmem:[%s480 + $0x70] sm:$0xff]
        %v496 = vld [vmem:[%s480 + $0x78] sm:$0xff]
        %v497 = vld [vmem:[%s480 + $0x80] sm:$0xff]
        %v498 = vld [vmem:[%s480 + $0x88] sm:$0xff]
        %v499 = vld [vmem:[%s480 + $0x90] sm:$0xff]
        %v500 = vld [vmem:[%s480 + $0x98] sm:$0xff]
        %v501 = vld [vmem:[%s480 + $0xa0] sm:$0xff]
        %v502 = vld [vmem:[%s480 + $0xa8] sm:$0xff]
        %v503 = vld [vmem:[%s480 + $0xb0] sm:$0xff]
        %v504 = vld [vmem:[%s480 + $0xb8] sm:$0xff]
        %v505 = vld [vmem:[%s480 + $0xc0] sm:$0xff]
        %v506 = vld [vmem:[%s480 + $0xc8] sm:$0xff]
        %v507 = vld [vmem:[%s480 + $0xd0] sm:$0xff]
        %v508 = vld [vmem:[%s480 + $0xd8] sm:$0xff]
        %v509 = vld [vmem:[%s480 + $0xe0] sm:$0xff]
        %v510 = vld [vmem:[%s480 + $0xe8] sm:$0xff]
        %v511 = vld [vmem:[%s480 + $0xf0] sm:$0xff]
        %v512 = vld [vmem:[%s480 + $0xf8] sm:$0xff]
        %s513 = sadd.s32 %s377, 1
        %s514 = sld [smem:[#allocation2 + %s513]]
        %s515 = smul.f32 %s514, 0.25
        %v516 = vstv %s515
        %v517 = vmul.f32 %v481, %v516
        %v518 = vmul.f32 %v482, %v516
        %v519 = vmul.f32 %v483, %v516
        %v520 = vmul.f32 %v484, %v516
        %v521 = vmul.f32 %v485, %v516
        %v522 = vmul.f32 %v486, %v516
        %v523 = vmul.f32 %v487, %v516
        %v524 = vmul.f32 %v488, %v516
        %v525 = vmul.f32 %v489, %v516
        %v526 = vmul.f32 %v490, %v516
        %v527 = vmul.f32 %v491, %v516
        %v528 = vmul.f32 %v492, %v516
        %v529 = vmul.f32 %v493, %v516
        %v530 = vmul.f32 %v494, %v516
        %v531 = vmul.f32 %v495, %v516
        %v532 = vmul.f32 %v496, %v516
        %v533 = vmul.f32 %v497, %v516
        %v534 = vmul.f32 %v498, %v516
        %v535 = vmul.f32 %v499, %v516
        %v536 = vmul.f32 %v500, %v516
        %v537 = vmul.f32 %v501, %v516
        %v538 = vmul.f32 %v502, %v516
        %v539 = vmul.f32 %v503, %v516
        %v540 = vmul.f32 %v504, %v516
        %v541 = vmul.f32 %v505, %v516
        %v542 = vmul.f32 %v506, %v516
        %v543 = vmul.f32 %v507, %v516
        %v544 = vmul.f32 %v508, %v516
        %v545 = vmul.f32 %v509, %v516
        %v546 = vmul.f32 %v510, %v516
        %v547 = vmul.f32 %v511, %v516
        %v548 = vmul.f32 %v512, %v516
        %v549 = vadd.f32 %v381, %v517
        %v550 = vadd.f32 %v382, %v518
        %v551 = vadd.f32 %v383, %v519
        %v552 = vadd.f32 %v384, %v520
        %v553 = vadd.f32 %v385, %v521
        %v554 = vadd.f32 %v386, %v522
        %v555 = vadd.f32 %v387, %v523
        %v556 = vadd.f32 %v388, %v524
        %v557 = vadd.f32 %v389, %v525
        %v558 = vadd.f32 %v390, %v526
        %v559 = vadd.f32 %v391, %v527
        %v560 = vadd.f32 %v392, %v528
        %v561 = vadd.f32 %v393, %v529
        %v562 = vadd.f32 %v394, %v530
        %v563 = vadd.f32 %v395, %v531
        %v564 = vadd.f32 %v396, %v532
        %v565 = vadd.f32 %v397, %v533
        %v566 = vadd.f32 %v398, %v534
        %v567 = vadd.f32 %v399, %v535
        %v568 = vadd.f32 %v400, %v536
        %v569 = vadd.f32 %v401, %v537
        %v570 = vadd.f32 %v402, %v538
        %v571 = vadd.f32 %v403, %v539
        %v572 = vadd.f32 %v404, %v540
        %v573 = vadd.f32 %v405, %v541
        %v574 = vadd.f32 %v406, %v542
        %v575 = vadd.f32 %v407, %v543
        %v576 = vadd.f32 %v408, %v544
        %v577 = vadd.f32 %v409, %v545
        %v578 = vadd.f32 %v410, %v546
        %v579 = vadd.f32 %v411, %v547
        %v580 = vadd.f32 %v412, %v548
        %s581 = scalar_lea.vmem %s303, 256 [#allocation9]
        %v582 = vld [vmem:[%s581] sm:$0xff]
        %v583 = vld [vmem:[%s581 + $0x8] sm:$0xff]
        %v584 = vld [vmem:[%s581 + $0x10] sm:$0xff]
        %v585 = vld [vmem:[%s581 + $0x18] sm:$0xff]
        %v586 = vld [vmem:[%s581 + $0x20] sm:$0xff]
        %v587 = vld [vmem:[%s581 + $0x28] sm:$0xff]
        %v588 = vld [vmem:[%s581 + $0x30] sm:$0xff]
        %v589 = vld [vmem:[%s581 + $0x38] sm:$0xff]
        %v590 = vld [vmem:[%s581 + $0x40] sm:$0xff]
        %v591 = vld [vmem:[%s581 + $0x48] sm:$0xff]
        %v592 = vld [vmem:[%s581 + $0x50] sm:$0xff]
        %v593 = vld [vmem:[%s581 + $0x58] sm:$0xff]
        %v594 = vld [vmem:[%s581 + $0x60] sm:$0xff]
        %v595 = vld [vmem:[%s581 + $0x68] sm:$0xff]
        %v596 = vld [vmem:[%s581 + $0x70] sm:$0xff]
        %v597 = vld [vmem:[%s581 + $0x78] sm:$0xff]
        %v598 = vld [vmem:[%s581 + $0x80] sm:$0xff]
        %v599 = vld [vmem:[%s581 + $0x88] sm:$0xff]
        %v600 = vld [vmem:[%s581 + $0x90] sm:$0xff]
        %v601 = vld [vmem:[%s581 + $0x98] sm:$0xff]
        %v602 = vld [vmem:[%s581 + $0xa0] sm:$0xff]
        %v603 = vld [vmem:[%s581 + $0xa8] sm:$0xff]
        %v604 = vld [vmem:[%s581 + $0xb0] sm:$0xff]
        %v605 = vld [vmem:[%s581 + $0xb8] sm:$0xff]
        %v606 = vld [vmem:[%s581 + $0xc0] sm:$0xff]
        %v607 = vld [vmem:[%s581 + $0xc8] sm:$0xff]
        %v608 = vld [vmem:[%s581 + $0xd0] sm:$0xff]
        %v609 = vld [vmem:[%s581 + $0xd8] sm:$0xff]
        %v610 = vld [vmem:[%s581 + $0xe0] sm:$0xff]
        %v611 = vld [vmem:[%s581 + $0xe8] sm:$0xff]
        %v612 = vld [vmem:[%s581 + $0xf0] sm:$0xff]
        %v613 = vld [vmem:[%s581 + $0xf8] sm:$0xff]
        %s614 = sld [smem:[#allocation6 + %s513]]
        %s615 = smul.f32 %s614, 0.25
        %v616 = vstv %s615
        %v617 = vmul.f32 %v582, %v616
        %v618 = vmul.f32 %v583, %v616
        %v619 = vmul.f32 %v584, %v616
        %v620 = vmul.f32 %v585, %v616
        %v621 = vmul.f32 %v586, %v616
        %v622 = vmul.f32 %v587, %v616
        %v623 = vmul.f32 %v588, %v616
        %v624 = vmul.f32 %v589, %v616
        %v625 = vmul.f32 %v590, %v616
        %v626 = vmul.f32 %v591, %v616
        %v627 = vmul.f32 %v592, %v616
        %v628 = vmul.f32 %v593, %v616
        %v629 = vmul.f32 %v594, %v616
        %v630 = vmul.f32 %v595, %v616
        %v631 = vmul.f32 %v596, %v616
        %v632 = vmul.f32 %v597, %v616
        %v633 = vmul.f32 %v598, %v616
        %v634 = vmul.f32 %v599, %v616
        %v635 = vmul.f32 %v600, %v616
        %v636 = vmul.f32 %v601, %v616
        %v637 = vmul.f32 %v602, %v616
        %v638 = vmul.f32 %v603, %v616
        %v639 = vmul.f32 %v604, %v616
        %v640 = vmul.f32 %v605, %v616
        %v641 = vmul.f32 %v606, %v616
        %v642 = vmul.f32 %v607, %v616
        %v643 = vmul.f32 %v608, %v616
        %v644 = vmul.f32 %v609, %v616
        %v645 = vmul.f32 %v610, %v616
        %v646 = vmul.f32 %v611, %v616
        %v647 = vmul.f32 %v612, %v616
        %v648 = vmul.f32 %v613, %v616
        %v649 = vadd.f32 %v448, %v617
        %v650 = vadd.f32 %v449, %v618
        %v651 = vadd.f32 %v450, %v619
        %v652 = vadd.f32 %v451, %v620
        %v653 = vadd.f32 %v452, %v621
        %v654 = vadd.f32 %v453, %v622
        %v655 = vadd.f32 %v454, %v623
        %v656 = vadd.f32 %v455, %v624
        %v657 = vadd.f32 %v456, %v625
        %v658 = vadd.f32 %v457, %v626
        %v659 = vadd.f32 %v458, %v627
        %v660 = vadd.f32 %v459, %v628
        %v661 = vadd.f32 %v460, %v629
        %v662 = vadd.f32 %v461, %v630
        %v663 = vadd.f32 %v462, %v631
        %v664 = vadd.f32 %v463, %v632
        %v665 = vadd.f32 %v464, %v633
        %v666 = vadd.f32 %v465, %v634
        %v667 = vadd.f32 %v466, %v635
        %v668 = vadd.f32 %v467, %v636
        %v669 = vadd.f32 %v468, %v637
        %v670 = vadd.f32 %v469, %v638
        %v671 = vadd.f32 %v470, %v639
        %v672 = vadd.f32 %v471, %v640
        %v673 = vadd.f32 %v472, %v641
        %v674 = vadd.f32 %v473, %v642
        %v675 = vadd.f32 %v474, %v643
        %v676 = vadd.f32 %v475, %v644
        %v677 = vadd.f32 %v476, %v645
        %v678 = vadd.f32 %v477, %v646
        %v679 = vadd.f32 %v478, %v647
        %v680 = vadd.f32 %v479, %v648
        %s681 = scalar_lea.vmem %s294, 512 [#allocation8]
        %v682 = vld [vmem:[%s681] sm:$0xff]
        %v683 = vld [vmem:[%s681 + $0x8] sm:$0xff]
        %v684 = vld [vmem:[%s681 + $0x10] sm:$0xff]
        %v685 = vld [vmem:[%s681 + $0x18] sm:$0xff]
        %v686 = vld [vmem:[%s681 + $0x20] sm:$0xff]
        %v687 = vld [vmem:[%s681 + $0x28] sm:$0xff]
        %v688 = vld [vmem:[%s681 + $0x30] sm:$0xff]
        %v689 = vld [vmem:[%s681 + $0x38] sm:$0xff]
        %v690 = vld [vmem:[%s681 + $0x40] sm:$0xff]
        %v691 = vld [vmem:[%s681 + $0x48] sm:$0xff]
        %v692 = vld [vmem:[%s681 + $0x50] sm:$0xff]
        %v693 = vld [vmem:[%s681 + $0x58] sm:$0xff]
        %v694 = vld [vmem:[%s681 + $0x60] sm:$0xff]
        %v695 = vld [vmem:[%s681 + $0x68] sm:$0xff]
        %v696 = vld [vmem:[%s681 + $0x70] sm:$0xff]
        %v697 = vld [vmem:[%s681 + $0x78] sm:$0xff]
        %v698 = vld [vmem:[%s681 + $0x80] sm:$0xff]
        %v699 = vld [vmem:[%s681 + $0x88] sm:$0xff]
        %v700 = vld [vmem:[%s681 + $0x90] sm:$0xff]
        %v701 = vld [vmem:[%s681 + $0x98] sm:$0xff]
        %v702 = vld [vmem:[%s681 + $0xa0] sm:$0xff]
        %v703 = vld [vmem:[%s681 + $0xa8] sm:$0xff]
        %v704 = vld [vmem:[%s681 + $0xb0] sm:$0xff]
        %v705 = vld [vmem:[%s681 + $0xb8] sm:$0xff]
        %v706 = vld [vmem:[%s681 + $0xc0] sm:$0xff]
        %v707 = vld [vmem:[%s681 + $0xc8] sm:$0xff]
        %v708 = vld [vmem:[%s681 + $0xd0] sm:$0xff]
        %v709 = vld [vmem:[%s681 + $0xd8] sm:$0xff]
        %v710 = vld [vmem:[%s681 + $0xe0] sm:$0xff]
        %v711 = vld [vmem:[%s681 + $0xe8] sm:$0xff]
        %v712 = vld [vmem:[%s681 + $0xf0] sm:$0xff]
        %v713 = vld [vmem:[%s681 + $0xf8] sm:$0xff]
        %s714 = sadd.s32 %s377, 2
        %s715 = sld [smem:[#allocation2 + %s714]]
        %s716 = smul.f32 %s715, 0.25
        %v717 = vstv %s716
        %v718 = vmul.f32 %v682, %v717
        %v719 = vmul.f32 %v683, %v717
        %v720 = vmul.f32 %v684, %v717
        %v721 = vmul.f32 %v685, %v717
        %v722 = vmul.f32 %v686, %v717
        %v723 = vmul.f32 %v687, %v717
        %v724 = vmul.f32 %v688, %v717
        %v725 = vmul.f32 %v689, %v717
        %v726 = vmul.f32 %v690, %v717
        %v727 = vmul.f32 %v691, %v717
        %v728 = vmul.f32 %v692, %v717
        %v729 = vmul.f32 %v693, %v717
        %v730 = vmul.f32 %v694, %v717
        %v731 = vmul.f32 %v695, %v717
        %v732 = vmul.f32 %v696, %v717
        %v733 = vmul.f32 %v697, %v717
        %v734 = vmul.f32 %v698, %v717
        %v735 = vmul.f32 %v699, %v717
        %v736 = vmul.f32 %v700, %v717
        %v737 = vmul.f32 %v701, %v717
        %v738 = vmul.f32 %v702, %v717
        %v739 = vmul.f32 %v703, %v717
        %v740 = vmul.f32 %v704, %v717
        %v741 = vmul.f32 %v705, %v717
        %v742 = vmul.f32 %v706, %v717
        %v743 = vmul.f32 %v707, %v717
        %v744 = vmul.f32 %v708, %v717
        %v745 = vmul.f32 %v709, %v717
        %v746 = vmul.f32 %v710, %v717
        %v747 = vmul.f32 %v711, %v717
        %v748 = vmul.f32 %v712, %v717
        %v749 = vmul.f32 %v713, %v717
        %v750 = vadd.f32 %v549, %v718
        %v751 = vadd.f32 %v550, %v719
        %v752 = vadd.f32 %v551, %v720
        %v753 = vadd.f32 %v552, %v721
        %v754 = vadd.f32 %v553, %v722
        %v755 = vadd.f32 %v554, %v723
        %v756 = vadd.f32 %v555, %v724
        %v757 = vadd.f32 %v556, %v725
        %v758 = vadd.f32 %v557, %v726
        %v759 = vadd.f32 %v558, %v727
        %v760 = vadd.f32 %v559, %v728
        %v761 = vadd.f32 %v560, %v729
        %v762 = vadd.f32 %v561, %v730
        %v763 = vadd.f32 %v562, %v731
        %v764 = vadd.f32 %v563, %v732
        %v765 = vadd.f32 %v564, %v733
        %v766 = vadd.f32 %v565, %v734
        %v767 = vadd.f32 %v566, %v735
        %v768 = vadd.f32 %v567, %v736
        %v769 = vadd.f32 %v568, %v737
        %v770 = vadd.f32 %v569, %v738
        %v771 = vadd.f32 %v570, %v739
        %v772 = vadd.f32 %v571, %v740
        %v773 = vadd.f32 %v572, %v741
        %v774 = vadd.f32 %v573, %v742
        %v775 = vadd.f32 %v574, %v743
        %v776 = vadd.f32 %v575, %v744
        %v777 = vadd.f32 %v576, %v745
        %v778 = vadd.f32 %v577, %v746
        %v779 = vadd.f32 %v578, %v747
        %v780 = vadd.f32 %v579, %v748
        %v781 = vadd.f32 %v580, %v749
        %s782 = scalar_lea.vmem %s303, 512 [#allocation9]
        %v783 = vld [vmem:[%s782] sm:$0xff]
        %v784 = vld [vmem:[%s782 + $0x8] sm:$0xff]
        %v785 = vld [vmem:[%s782 + $0x10] sm:$0xff]
        %v786 = vld [vmem:[%s782 + $0x18] sm:$0xff]
        %v787 = vld [vmem:[%s782 + $0x20] sm:$0xff]
        %v788 = vld [vmem:[%s782 + $0x28] sm:$0xff]
        %v789 = vld [vmem:[%s782 + $0x30] sm:$0xff]
        %v790 = vld [vmem:[%s782 + $0x38] sm:$0xff]
        %v791 = vld [vmem:[%s782 + $0x40] sm:$0xff]
        %v792 = vld [vmem:[%s782 + $0x48] sm:$0xff]
        %v793 = vld [vmem:[%s782 + $0x50] sm:$0xff]
        %v794 = vld [vmem:[%s782 + $0x58] sm:$0xff]
        %v795 = vld [vmem:[%s782 + $0x60] sm:$0xff]
        %v796 = vld [vmem:[%s782 + $0x68] sm:$0xff]
        %v797 = vld [vmem:[%s782 + $0x70] sm:$0xff]
        %v798 = vld [vmem:[%s782 + $0x78] sm:$0xff]
        %v799 = vld [vmem:[%s782 + $0x80] sm:$0xff]
        %v800 = vld [vmem:[%s782 + $0x88] sm:$0xff]
        %v801 = vld [vmem:[%s782 + $0x90] sm:$0xff]
        %v802 = vld [vmem:[%s782 + $0x98] sm:$0xff]
        %v803 = vld [vmem:[%s782 + $0xa0] sm:$0xff]
        %v804 = vld [vmem:[%s782 + $0xa8] sm:$0xff]
        %v805 = vld [vmem:[%s782 + $0xb0] sm:$0xff]
        %v806 = vld [vmem:[%s782 + $0xb8] sm:$0xff]
        %v807 = vld [vmem:[%s782 + $0xc0] sm:$0xff]
        %v808 = vld [vmem:[%s782 + $0xc8] sm:$0xff]
        %v809 = vld [vmem:[%s782 + $0xd0] sm:$0xff]
        %v810 = vld [vmem:[%s782 + $0xd8] sm:$0xff]
        %v811 = vld [vmem:[%s782 + $0xe0] sm:$0xff]
        %v812 = vld [vmem:[%s782 + $0xe8] sm:$0xff]
        %v813 = vld [vmem:[%s782 + $0xf0] sm:$0xff]
        %v814 = vld [vmem:[%s782 + $0xf8] sm:$0xff]
        %s815 = sld [smem:[#allocation6 + %s714]]
        %s816 = smul.f32 %s815, 0.25
        %v817 = vstv %s816
        %v818 = vmul.f32 %v783, %v817
        %v819 = vmul.f32 %v784, %v817
        %v820 = vmul.f32 %v785, %v817
        %v821 = vmul.f32 %v786, %v817
        %v822 = vmul.f32 %v787, %v817
        %v823 = vmul.f32 %v788, %v817
        %v824 = vmul.f32 %v789, %v817
        %v825 = vmul.f32 %v790, %v817
        %v826 = vmul.f32 %v791, %v817
        %v827 = vmul.f32 %v792, %v817
        %v828 = vmul.f32 %v793, %v817
        %v829 = vmul.f32 %v794, %v817
        %v830 = vmul.f32 %v795, %v817
        %v831 = vmul.f32 %v796, %v817
        %v832 = vmul.f32 %v797, %v817
        %v833 = vmul.f32 %v798, %v817
        %v834 = vmul.f32 %v799, %v817
        %v835 = vmul.f32 %v800, %v817
        %v836 = vmul.f32 %v801, %v817
        %v837 = vmul.f32 %v802, %v817
        %v838 = vmul.f32 %v803, %v817
        %v839 = vmul.f32 %v804, %v817
        %v840 = vmul.f32 %v805, %v817
        %v841 = vmul.f32 %v806, %v817
        %v842 = vmul.f32 %v807, %v817
        %v843 = vmul.f32 %v808, %v817
        %v844 = vmul.f32 %v809, %v817
        %v845 = vmul.f32 %v810, %v817
        %v846 = vmul.f32 %v811, %v817
        %v847 = vmul.f32 %v812, %v817
        %v848 = vmul.f32 %v813, %v817
        %v849 = vmul.f32 %v814, %v817
        %v850 = vadd.f32 %v649, %v818
        %v851 = vadd.f32 %v650, %v819
        %v852 = vadd.f32 %v651, %v820
        %v853 = vadd.f32 %v652, %v821
        %v854 = vadd.f32 %v653, %v822
        %v855 = vadd.f32 %v654, %v823
        %v856 = vadd.f32 %v655, %v824
        %v857 = vadd.f32 %v656, %v825
        %v858 = vadd.f32 %v657, %v826
        %v859 = vadd.f32 %v658, %v827
        %v860 = vadd.f32 %v659, %v828
        %v861 = vadd.f32 %v660, %v829
        %v862 = vadd.f32 %v661, %v830
        %v863 = vadd.f32 %v662, %v831
        %v864 = vadd.f32 %v663, %v832
        %v865 = vadd.f32 %v664, %v833
        %v866 = vadd.f32 %v665, %v834
        %v867 = vadd.f32 %v666, %v835
        %v868 = vadd.f32 %v667, %v836
        %v869 = vadd.f32 %v668, %v837
        %v870 = vadd.f32 %v669, %v838
        %v871 = vadd.f32 %v670, %v839
        %v872 = vadd.f32 %v671, %v840
        %v873 = vadd.f32 %v672, %v841
        %v874 = vadd.f32 %v673, %v842
        %v875 = vadd.f32 %v674, %v843
        %v876 = vadd.f32 %v675, %v844
        %v877 = vadd.f32 %v676, %v845
        %v878 = vadd.f32 %v677, %v846
        %v879 = vadd.f32 %v678, %v847
        %v880 = vadd.f32 %v679, %v848
        %v881 = vadd.f32 %v680, %v849
        %s882 = scalar_lea.vmem %s294, 768 [#allocation8]
        %v883 = vld [vmem:[%s882] sm:$0xff]
        %v884 = vld [vmem:[%s882 + $0x8] sm:$0xff]
        %v885 = vld [vmem:[%s882 + $0x10] sm:$0xff]
        %v886 = vld [vmem:[%s882 + $0x18] sm:$0xff]
        %v887 = vld [vmem:[%s882 + $0x20] sm:$0xff]
        %v888 = vld [vmem:[%s882 + $0x28] sm:$0xff]
        %v889 = vld [vmem:[%s882 + $0x30] sm:$0xff]
        %v890 = vld [vmem:[%s882 + $0x38] sm:$0xff]
        %v891 = vld [vmem:[%s882 + $0x40] sm:$0xff]
        %v892 = vld [vmem:[%s882 + $0x48] sm:$0xff]
        %v893 = vld [vmem:[%s882 + $0x50] sm:$0xff]
        %v894 = vld [vmem:[%s882 + $0x58] sm:$0xff]
        %v895 = vld [vmem:[%s882 + $0x60] sm:$0xff]
        %v896 = vld [vmem:[%s882 + $0x68] sm:$0xff]
        %v897 = vld [vmem:[%s882 + $0x70] sm:$0xff]
        %v898 = vld [vmem:[%s882 + $0x78] sm:$0xff]
        %v899 = vld [vmem:[%s882 + $0x80] sm:$0xff]
        %v900 = vld [vmem:[%s882 + $0x88] sm:$0xff]
        %v901 = vld [vmem:[%s882 + $0x90] sm:$0xff]
        %v902 = vld [vmem:[%s882 + $0x98] sm:$0xff]
        %v903 = vld [vmem:[%s882 + $0xa0] sm:$0xff]
        %v904 = vld [vmem:[%s882 + $0xa8] sm:$0xff]
        %v905 = vld [vmem:[%s882 + $0xb0] sm:$0xff]
        %v906 = vld [vmem:[%s882 + $0xb8] sm:$0xff]
        %v907 = vld [vmem:[%s882 + $0xc0] sm:$0xff]
        %v908 = vld [vmem:[%s882 + $0xc8] sm:$0xff]
        %v909 = vld [vmem:[%s882 + $0xd0] sm:$0xff]
        %v910 = vld [vmem:[%s882 + $0xd8] sm:$0xff]
        %v911 = vld [vmem:[%s882 + $0xe0] sm:$0xff]
        %v912 = vld [vmem:[%s882 + $0xe8] sm:$0xff]
        %v913 = vld [vmem:[%s882 + $0xf0] sm:$0xff]
        %v914 = vld [vmem:[%s882 + $0xf8] sm:$0xff]
        %s915 = sadd.s32 %s377, 3
        %s916 = sld [smem:[#allocation2 + %s915]]
        %s917 = smul.f32 %s916, 0.25
        %v918 = vstv %s917
        %v919 = vmul.f32 %v883, %v918
        %v920 = vmul.f32 %v884, %v918
        %v921 = vmul.f32 %v885, %v918
        %v922 = vmul.f32 %v886, %v918
        %v923 = vmul.f32 %v887, %v918
        %v924 = vmul.f32 %v888, %v918
        %v925 = vmul.f32 %v889, %v918
        %v926 = vmul.f32 %v890, %v918
        %v927 = vmul.f32 %v891, %v918
        %v928 = vmul.f32 %v892, %v918
        %v929 = vmul.f32 %v893, %v918
        %v930 = vmul.f32 %v894, %v918
        %v931 = vmul.f32 %v895, %v918
        %v932 = vmul.f32 %v896, %v918
        %v933 = vmul.f32 %v897, %v918
        %v934 = vmul.f32 %v898, %v918
        %v935 = vmul.f32 %v899, %v918
        %v936 = vmul.f32 %v900, %v918
        %v937 = vmul.f32 %v901, %v918
        %v938 = vmul.f32 %v902, %v918
        %v939 = vmul.f32 %v903, %v918
        %v940 = vmul.f32 %v904, %v918
        %v941 = vmul.f32 %v905, %v918
        %v942 = vmul.f32 %v906, %v918
        %v943 = vmul.f32 %v907, %v918
        %v944 = vmul.f32 %v908, %v918
        %v945 = vmul.f32 %v909, %v918
        %v946 = vmul.f32 %v910, %v918
        %v947 = vmul.f32 %v911, %v918
        %v948 = vmul.f32 %v912, %v918
        %v949 = vmul.f32 %v913, %v918
        %v950 = vmul.f32 %v914, %v918
        %v951 = vadd.f32 %v750, %v919
        %v952 = vadd.f32 %v751, %v920
        %v953 = vadd.f32 %v752, %v921
        %v954 = vadd.f32 %v753, %v922
        %v955 = vadd.f32 %v754, %v923
        %v956 = vadd.f32 %v755, %v924
        %v957 = vadd.f32 %v756, %v925
        %v958 = vadd.f32 %v757, %v926
        %v959 = vadd.f32 %v758, %v927
        %v960 = vadd.f32 %v759, %v928
        %v961 = vadd.f32 %v760, %v929
        %v962 = vadd.f32 %v761, %v930
        %v963 = vadd.f32 %v762, %v931
        %v964 = vadd.f32 %v763, %v932
        %v965 = vadd.f32 %v764, %v933
        %v966 = vadd.f32 %v765, %v934
        %v967 = vadd.f32 %v766, %v935
        %v968 = vadd.f32 %v767, %v936
        %v969 = vadd.f32 %v768, %v937
        %v970 = vadd.f32 %v769, %v938
        %v971 = vadd.f32 %v770, %v939
        %v972 = vadd.f32 %v771, %v940
        %v973 = vadd.f32 %v772, %v941
        %v974 = vadd.f32 %v773, %v942
        %v975 = vadd.f32 %v774, %v943
        %v976 = vadd.f32 %v775, %v944
        %v977 = vadd.f32 %v776, %v945
        %v978 = vadd.f32 %v777, %v946
        %v979 = vadd.f32 %v778, %v947
        %v980 = vadd.f32 %v779, %v948
        %v981 = vadd.f32 %v780, %v949
        %v982 = vadd.f32 %v781, %v950
        %s983 = scalar_lea.vmem %s303, 768 [#allocation9]
        %v984 = vld [vmem:[%s983] sm:$0xff]
        %v985 = vld [vmem:[%s983 + $0x8] sm:$0xff]
        %v986 = vld [vmem:[%s983 + $0x10] sm:$0xff]
        %v987 = vld [vmem:[%s983 + $0x18] sm:$0xff]
        %v988 = vld [vmem:[%s983 + $0x20] sm:$0xff]
        %v989 = vld [vmem:[%s983 + $0x28] sm:$0xff]
        %v990 = vld [vmem:[%s983 + $0x30] sm:$0xff]
        %v991 = vld [vmem:[%s983 + $0x38] sm:$0xff]
        %v992 = vld [vmem:[%s983 + $0x40] sm:$0xff]
        %v993 = vld [vmem:[%s983 + $0x48] sm:$0xff]
        %v994 = vld [vmem:[%s983 + $0x50] sm:$0xff]
        %v995 = vld [vmem:[%s983 + $0x58] sm:$0xff]
        %v996 = vld [vmem:[%s983 + $0x60] sm:$0xff]
        %v997 = vld [vmem:[%s983 + $0x68] sm:$0xff]
        %v998 = vld [vmem:[%s983 + $0x70] sm:$0xff]
        %v999 = vld [vmem:[%s983 + $0x78] sm:$0xff]
        %v1000 = vld [vmem:[%s983 + $0x80] sm:$0xff]
        %v1001 = vld [vmem:[%s983 + $0x88] sm:$0xff]
        %v1002 = vld [vmem:[%s983 + $0x90] sm:$0xff]
        %v1003 = vld [vmem:[%s983 + $0x98] sm:$0xff]
        %v1004 = vld [vmem:[%s983 + $0xa0] sm:$0xff]
        %v1005 = vld [vmem:[%s983 + $0xa8] sm:$0xff]
        %v1006 = vld [vmem:[%s983 + $0xb0] sm:$0xff]
        %v1007 = vld [vmem:[%s983 + $0xb8] sm:$0xff]
        %v1008 = vld [vmem:[%s983 + $0xc0] sm:$0xff]
        %v1009 = vld [vmem:[%s983 + $0xc8] sm:$0xff]
        %v1010 = vld [vmem:[%s983 + $0xd0] sm:$0xff]
        %v1011 = vld [vmem:[%s983 + $0xd8] sm:$0xff]
        %v1012 = vld [vmem:[%s983 + $0xe0] sm:$0xff]
        %v1013 = vld [vmem:[%s983 + $0xe8] sm:$0xff]
        %v1014 = vld [vmem:[%s983 + $0xf0] sm:$0xff]
        %v1015 = vld [vmem:[%s983 + $0xf8] sm:$0xff]
        %s1016 = sld [smem:[#allocation6 + %s915]]
        %s1017 = smul.f32 %s1016, 0.25
        %v1018 = vstv %s1017
        %v1019 = vmul.f32 %v984, %v1018
        %v1020 = vmul.f32 %v985, %v1018
        %v1021 = vmul.f32 %v986, %v1018
        %v1022 = vmul.f32 %v987, %v1018
        %v1023 = vmul.f32 %v988, %v1018
        %v1024 = vmul.f32 %v989, %v1018
        %v1025 = vmul.f32 %v990, %v1018
        %v1026 = vmul.f32 %v991, %v1018
        %v1027 = vmul.f32 %v992, %v1018
        %v1028 = vmul.f32 %v993, %v1018
        %v1029 = vmul.f32 %v994, %v1018
        %v1030 = vmul.f32 %v995, %v1018
        %v1031 = vmul.f32 %v996, %v1018
        %v1032 = vmul.f32 %v997, %v1018
        %v1033 = vmul.f32 %v998, %v1018
        %v1034 = vmul.f32 %v999, %v1018
        %v1035 = vmul.f32 %v1000, %v1018
        %v1036 = vmul.f32 %v1001, %v1018
        %v1037 = vmul.f32 %v1002, %v1018
        %v1038 = vmul.f32 %v1003, %v1018
        %v1039 = vmul.f32 %v1004, %v1018
        %v1040 = vmul.f32 %v1005, %v1018
        %v1041 = vmul.f32 %v1006, %v1018
        %v1042 = vmul.f32 %v1007, %v1018
        %v1043 = vmul.f32 %v1008, %v1018
        %v1044 = vmul.f32 %v1009, %v1018
        %v1045 = vmul.f32 %v1010, %v1018
        %v1046 = vmul.f32 %v1011, %v1018
        %v1047 = vmul.f32 %v1012, %v1018
        %v1048 = vmul.f32 %v1013, %v1018
        %v1049 = vmul.f32 %v1014, %v1018
        %v1050 = vmul.f32 %v1015, %v1018
        %v1051 = vadd.f32 %v850, %v1019
        %v1052 = vadd.f32 %v851, %v1020
        %v1053 = vadd.f32 %v852, %v1021
        %v1054 = vadd.f32 %v853, %v1022
        %v1055 = vadd.f32 %v854, %v1023
        %v1056 = vadd.f32 %v855, %v1024
        %v1057 = vadd.f32 %v856, %v1025
        %v1058 = vadd.f32 %v857, %v1026
        %v1059 = vadd.f32 %v858, %v1027
        %v1060 = vadd.f32 %v859, %v1028
        %v1061 = vadd.f32 %v860, %v1029
        %v1062 = vadd.f32 %v861, %v1030
        %v1063 = vadd.f32 %v862, %v1031
        %v1064 = vadd.f32 %v863, %v1032
        %v1065 = vadd.f32 %v864, %v1033
        %v1066 = vadd.f32 %v865, %v1034
        %v1067 = vadd.f32 %v866, %v1035
        %v1068 = vadd.f32 %v867, %v1036
        %v1069 = vadd.f32 %v868, %v1037
        %v1070 = vadd.f32 %v869, %v1038
        %v1071 = vadd.f32 %v870, %v1039
        %v1072 = vadd.f32 %v871, %v1040
        %v1073 = vadd.f32 %v872, %v1041
        %v1074 = vadd.f32 %v873, %v1042
        %v1075 = vadd.f32 %v874, %v1043
        %v1076 = vadd.f32 %v875, %v1044
        %v1077 = vadd.f32 %v876, %v1045
        %v1078 = vadd.f32 %v877, %v1046
        %v1079 = vadd.f32 %v878, %v1047
        %v1080 = vadd.f32 %v879, %v1048
        %v1081 = vadd.f32 %v880, %v1049
        %v1082 = vadd.f32 %v881, %v1050
        %1083 = vst [vmem:[%s333] sm:$0xff] %v951
        %1084 = vst [vmem:[%s333 + $0x8] sm:$0xff] %v952
        %1085 = vst [vmem:[%s333 + $0x10] sm:$0xff] %v953
        %1086 = vst [vmem:[%s333 + $0x18] sm:$0xff] %v954
        %1087 = vst [vmem:[%s333 + $0x20] sm:$0xff] %v955
        %1088 = vst [vmem:[%s333 + $0x28] sm:$0xff] %v956
        %1089 = vst [vmem:[%s333 + $0x30] sm:$0xff] %v957
        %1090 = vst [vmem:[%s333 + $0x38] sm:$0xff] %v958
        %1091 = vst [vmem:[%s333 + $0x40] sm:$0xff] %v959
        %1092 = vst [vmem:[%s333 + $0x48] sm:$0xff] %v960
        %1093 = vst [vmem:[%s333 + $0x50] sm:$0xff] %v961
        %1094 = vst [vmem:[%s333 + $0x58] sm:$0xff] %v962
        %1095 = vst [vmem:[%s333 + $0x60] sm:$0xff] %v963
        %1096 = vst [vmem:[%s333 + $0x68] sm:$0xff] %v964
        %1097 = vst [vmem:[%s333 + $0x70] sm:$0xff] %v965
        %1098 = vst [vmem:[%s333 + $0x78] sm:$0xff] %v966
        %1099 = vst [vmem:[%s333 + $0x80] sm:$0xff] %v967
        %1100 = vst [vmem:[%s333 + $0x88] sm:$0xff] %v968
        %1101 = vst [vmem:[%s333 + $0x90] sm:$0xff] %v969
        %1102 = vst [vmem:[%s333 + $0x98] sm:$0xff] %v970
        %1103 = vst [vmem:[%s333 + $0xa0] sm:$0xff] %v971
        %1104 = vst [vmem:[%s333 + $0xa8] sm:$0xff] %v972
        %1105 = vst [vmem:[%s333 + $0xb0] sm:$0xff] %v973
        %1106 = vst [vmem:[%s333 + $0xb8] sm:$0xff] %v974
        %1107 = vst [vmem:[%s333 + $0xc0] sm:$0xff] %v975
        %1108 = vst [vmem:[%s333 + $0xc8] sm:$0xff] %v976
        %1109 = vst [vmem:[%s333 + $0xd0] sm:$0xff] %v977
        %1110 = vst [vmem:[%s333 + $0xd8] sm:$0xff] %v978
        %1111 = vst [vmem:[%s333 + $0xe0] sm:$0xff] %v979
        %1112 = vst [vmem:[%s333 + $0xe8] sm:$0xff] %v980
        %1113 = vst [vmem:[%s333 + $0xf0] sm:$0xff] %v981
        %1114 = vst [vmem:[%s333 + $0xf8] sm:$0xff] %v982
        %1115 = vst [vmem:[%s340] sm:$0xff] %v1051
        %1116 = vst [vmem:[%s340 + $0x8] sm:$0xff] %v1052
        %1117 = vst [vmem:[%s340 + $0x10] sm:$0xff] %v1053
        %1118 = vst [vmem:[%s340 + $0x18] sm:$0xff] %v1054
        %1119 = vst [vmem:[%s340 + $0x20] sm:$0xff] %v1055
        %1120 = vst [vmem:[%s340 + $0x28] sm:$0xff] %v1056
        %1121 = vst [vmem:[%s340 + $0x30] sm:$0xff] %v1057
        %1122 = vst [vmem:[%s340 + $0x38] sm:$0xff] %v1058
        %1123 = vst [vmem:[%s340 + $0x40] sm:$0xff] %v1059
        %1124 = vst [vmem:[%s340 + $0x48] sm:$0xff] %v1060
        %1125 = vst [vmem:[%s340 + $0x50] sm:$0xff] %v1061
        %1126 = vst [vmem:[%s340 + $0x58] sm:$0xff] %v1062
        %1127 = vst [vmem:[%s340 + $0x60] sm:$0xff] %v1063
        %1128 = vst [vmem:[%s340 + $0x68] sm:$0xff] %v1064
        %1129 = vst [vmem:[%s340 + $0x70] sm:$0xff] %v1065
        %1130 = vst [vmem:[%s340 + $0x78] sm:$0xff] %v1066
        %1131 = vst [vmem:[%s340 + $0x80] sm:$0xff] %v1067
        %1132 = vst [vmem:[%s340 + $0x88] sm:$0xff] %v1068
        %1133 = vst [vmem:[%s340 + $0x90] sm:$0xff] %v1069
        %1134 = vst [vmem:[%s340 + $0x98] sm:$0xff] %v1070
        %1135 = vst [vmem:[%s340 + $0xa0] sm:$0xff] %v1071
        %1136 = vst [vmem:[%s340 + $0xa8] sm:$0xff] %v1072
        %1137 = vst [vmem:[%s340 + $0xb0] sm:$0xff] %v1073
        %1138 = vst [vmem:[%s340 + $0xb8] sm:$0xff] %v1074
        %1139 = vst [vmem:[%s340 + $0xc0] sm:$0xff] %v1075
        %1140 = vst [vmem:[%s340 + $0xc8] sm:$0xff] %v1076
        %1141 = vst [vmem:[%s340 + $0xd0] sm:$0xff] %v1077
        %1142 = vst [vmem:[%s340 + $0xd8] sm:$0xff] %v1078
        %1143 = vst [vmem:[%s340 + $0xe0] sm:$0xff] %v1079
        %1144 = vst [vmem:[%s340 + $0xe8] sm:$0xff] %v1080
        %1145 = vst [vmem:[%s340 + $0xf0] sm:$0xff] %v1081
        %1146 = vst [vmem:[%s340 + $0xf8] sm:$0xff] %v1082
        %s1147 = sand.u32 %s151, 1
        %s1148 = scalar_lea.sflag [#allocation4], %s1147
        %s1149 = sand.u32 %s151, 1
        %s1150 = smul.addr %s1149, 256
        %s1151 = scalar_lea.vmem [#allocation11], %s1150
        %s1152 = sand.u32 %s179, 1
        %s1153 = scalar_lea.sflag [#allocation13], %s1152
        %s1154 = sand.u32 %s179, 1
        %s1155 = smul.addr %s1154, 256
        %s1156 = scalar_lea.vmem [#allocation12], %s1155
        // Predicated region
        $region53: #{tpu_custom_call.1} parent=35 // pred_check
          %p1157 = pneg %p161
        $region54: #{tpu_custom_call.1} parent=35 // pred_check_branch
          %1159 = sbr.rel (%p1157) target = $region56
        $region55: #{tpu_custom_call.1} parent=35 // pred_region
          %s1160 = smul.u32 32, %s36
          %s1162 = ssub.s32 4096, 4096
          %1163 = vsyncadd %s1148, %s1162
          %s1164 = smul.addr %s35, 32
          %s1165 = sadd.s32 %s1160, %s1164
          %s1166 = smul.addr %s1165, 128
          %s1167 = scalar_lea.hbm %s4, %s1166
          %s1168 = sshll.u32 %s1151, 4
          %s1169 = int_to_ptr.vmem [resolvable:$true] %s1168
          %1174 = dma.vmem_to_hbm [thread:$0]  %s1169, 4096, %s1167, %s1148, 128, 128, 8
        $region56: #{tpu_custom_call.1} parent=35 // pred_fallthru
          _
        // Predicated region
        $region57: #{tpu_custom_call.1} parent=35 // pred_check
          %p1175 = pneg %p189
        $region58: #{tpu_custom_call.1} parent=35 // pred_check_branch
          %1177 = sbr.rel (%p1175) target = $region60
        $region59: #{tpu_custom_call.1} parent=35 // pred_region
          %s1178 = smul.u32 32, %s36
          %s1180 = ssub.s32 4096, 4096
          %1181 = vsyncadd %s1153, %s1180
          %s1182 = smul.addr %s35, 32
          %s1183 = sadd.s32 %s1178, %s1182
          %s1184 = smul.addr %s1183, 128
          %s1185 = scalar_lea.hbm %s5, %s1184
          %s1186 = sshll.u32 %s1156, 4
          %s1187 = int_to_ptr.vmem [resolvable:$true] %s1186
          %1192 = dma.vmem_to_hbm [thread:$0]  %s1187, 4096, %s1185, %s1153, 128, 128, 8
        $region60: #{tpu_custom_call.1} parent=35 // pred_fallthru
          _
      $region36: #{tpu_custom_call.1} parent=5 // pred_fallthru
        _
      %p1193 = scmp.le.s32.totalorder 2, %s26
      // Predicated region
      $region61: #{tpu_custom_call.1} parent=5 // pred_check
        %p1194 = pneg %p1193
      $region62: #{tpu_custom_call.1} parent=5 // pred_check_branch
        %1196 = sbr.rel (%p1194) target = $region64
      $region63: #{tpu_custom_call.1} parent=5 // pred_region
        %s1197 = ssub.s32 %s26, 2
        // Predicated region
        $region65: #{tpu_custom_call.1} parent=63 // pred_check
          %p1198 = pneg %p167
        $region66: #{tpu_custom_call.1} parent=63 // pred_check_branch
          %1200 = sbr.rel (%p1198) target = $region68
        $region67: #{tpu_custom_call.1} parent=63 // pred_region
          %s1201 = sand.u32 %s152, 1
          %s1202 = scalar_lea.sflag [#allocation4], %s1201
          %s1203 = sand.u32 %s152, 1
          %s1204 = smul.addr %s1203, 256
          %s1205 = scalar_lea.vmem [#allocation11], %s1204
          %1206 = dma.done %s1202, 4096
        $region68: #{tpu_custom_call.1} parent=63 // pred_fallthru
          _
        // Predicated region
        $region69: #{tpu_custom_call.1} parent=63 // pred_check
          %p1207 = pneg %p195
        $region70: #{tpu_custom_call.1} parent=63 // pred_check_branch
          %1209 = sbr.rel (%p1207) target = $region72
        $region71: #{tpu_custom_call.1} parent=63 // pred_region
          %s1210 = sand.u32 %s180, 1
          %s1211 = scalar_lea.sflag [#allocation13], %s1210
          %s1212 = sand.u32 %s180, 1
          %s1213 = smul.addr %s1212, 256
          %s1214 = scalar_lea.vmem [#allocation12], %s1213
          %1215 = dma.done %s1211, 4096
        $region72: #{tpu_custom_call.1} parent=63 // pred_fallthru
          _
      $region64: #{tpu_custom_call.1} parent=5 // pred_fallthru
        _
    $region6: #{tpu_custom_call.1} parent=1 // loop_footer
      %s30 = sadd.s32 1, %s26
    $region7: #{tpu_custom_call.1} parent=1 // loop_footer_branch
      %25 = sbr.rel target = $region3
    $region8: #{tpu_custom_call.1} parent=1 // loop_exit
      _
    %1216 = vsyncpa [#allocation3], 1
    %s1217 = scalar_lea.sflag [#allocation3], 1
    %1218 = vsyncpa %s1217, 1
    %1219 = vsyncpa [#allocation10], 1
    %s1220 = scalar_lea.sflag [#allocation10], 1
    %1221 = vsyncpa %s1220, 1
    %1222 = vsyncpa [#allocation4], 1
    %s1223 = scalar_lea.sflag [#allocation4], 1
    %1224 = vsyncpa %s1223, 1
    %1225 = vsyncpa [#allocation13], 1
    %s1226 = scalar_lea.sflag [#allocation13], 1
    %1227 = vsyncpa %s1226, 1
    %1228 = vsyncpa [#allocation5], 1
    %s1229 = scalar_lea.sflag [#allocation5], 1
    %1230 = vsyncpa %s1229, 1
    %1231 = vsyncpa [#allocation7], 1

</llo_original>
